<compile_context>
chip_gen: v7x
topology: tpu7x:2x2x1
jax: 0.10.0
libtpu: 0.0.40
codegen_flags: <defaults>
</compile_context>

<pallas_src>
import functools
import math

import jax
import jax.numpy as jnp
from jax import lax
from jax.experimental import pallas as pl
from jax.experimental.pallas import tpu as pltpu

LN_EPS = 1e-12  # matches nn.LayerNorm(output_feat_size, eps=1e-12)


def _round_up(x, m):
    return ((x + m - 1) // m) * m


def _feature_resizer_kernel(x_ref, w_ref, p_ref, o_ref, *, do_ln):
    # Grid-invariant params (constant index_maps): VMEM-resident across steps.
    x = x_ref[...]          # (TM, C1), f32 or bf16 (cast done in the wrapper)
    w = w_ref[...]          # (C1, C2), same dtype as x
    b = p_ref[0:1, :]       # (1, C2) f32 bias

    # fc: (TM, C1) @ (C1, C2) on the MXU, f32 accumulation; bias add in f32.
    y = jnp.dot(x, w, preferred_element_type=jnp.float32) + b

    if do_ln:
        g = p_ref[1:2, :]     # (1, C2) LN gamma
        beta = p_ref[2:3, :]  # (1, C2) LN beta
        mu = jnp.mean(y, axis=-1, keepdims=True)
        var = jnp.mean((y - mu) ** 2, axis=-1, keepdims=True)  # biased, as PyTorch
        y = (y - mu) * lax.rsqrt(var + LN_EPS) * g + beta

    # Dropout is identity in eval mode.
    # TODO(synk): training-mode dropout would need pltpu.prng_seed/prng_random_bits.
    o_ref[...] = y.astype(o_ref.dtype)


def feature_resizer_forward(encoder_features, w, b, gamma=None, beta=None,
                            *, do_ln=True, matmul_dtype=None, out_dtype=None,
                            max_row_tile=2048,
                            vmem_budget_bytes=16 * 1024 * 1024):
    """encoder_features: (..., C1). w: (C1, C2) (i.e. PyTorch fc.weight.T),
    b/gamma/beta: (C2,). Returns (..., C2) in `out_dtype` (default: input dtype)."""
    orig_shape = encoder_features.shape
    c1 = orig_shape[-1]
    c2 = w.shape[1]
    m = int(math.prod(orig_shape[:-1]))

    x2 = encoder_features.reshape(m, c1)

    if out_dtype is None:
        out_dtype = encoder_features.dtype
    out_dtype = jnp.dtype(out_dtype)

    if matmul_dtype is not None:
        # Cast in the wrapper: halves x HBM reads and the resident weight's
        # VMEM footprint; accumulation / LN remain f32 inside the kernel.
        x2 = x2.astype(matmul_dtype)
        w = w.astype(matmul_dtype)

    # Collapse bias / gamma / beta into one resident (3, C2) f32 param block.
    if gamma is None:
        gamma = jnp.zeros((c2,), jnp.float32)
    if beta is None:
        beta = jnp.zeros((c2,), jnp.float32)
    params = jnp.stack([b.astype(jnp.float32),
                        gamma.astype(jnp.float32),
                        beta.astype(jnp.float32)], axis=0)  # (3, C2)

    # --- Row-tile selection against an explicit VMEM budget -----------------
    x_bytes = jnp.dtype(x2.dtype).itemsize
    w_bytes = jnp.dtype(w.dtype).itemsize
    o_bytes = out_dtype.itemsize
    fixed_bytes = 2 * (c1 * c2 * w_bytes + 3 * c2 * 4)          # resident w + params
    per_row_bytes = 2 * (c1 * x_bytes + c2 * o_bytes)           # dbl-buffered x & out
    tm = max(8, (vmem_budget_bytes - fixed_bytes) // max(per_row_bytes, 1))
    tm = max(8, min(max_row_tile, tm) // 8 * 8)
    # Keep >= 2 grid steps when there is enough work so both v7x TCs get a share.
    if m >= 16 and tm >= m:
        tm = max(8, _round_up(pl.cdiv(m, 2), 8))
    tm = min(tm, _round_up(m, 8))

    grid = (pl.cdiv(m, tm),)  # partial last block: writeback is clipped by Pallas

    est_vmem = fixed_bytes + per_row_bytes * tm + (1 << 20)
    cp_kwargs = dict(dimension_semantics=("parallel",))
    if est_vmem > (32 << 20):  # only raise the scoped limit when actually needed
        cp_kwargs["vmem_limit_bytes"] = int(min(est_vmem, 128 << 20))

    kernel = functools.partial(_feature_resizer_kernel, do_ln=do_ln)

    out = pl.pallas_call(
        kernel,
        out_shape=jax.ShapeDtypeStruct((m, c2), out_dtype),
        grid=grid,
        in_specs=[
            pl.BlockSpec((tm, c1), lambda i: (i, 0)),   # activations (tiled rows)
            pl.BlockSpec((c1, c2), lambda i: (0, 0)),   # fc weight (resident)
            pl.BlockSpec((3, c2), lambda i: (0, 0)),    # bias / gamma / beta (resident)
        ],
        out_specs=pl.BlockSpec((tm, c2), lambda i: (i, 0)),  # lane-dense writeback
        compiler_params=pltpu.CompilerParams(**cp_kwargs),
    )(x2, w, params)

    return out.reshape(*orig_shape[:-1], c2)


def feature_resizer_ref(encoder_features, w, b, gamma, beta, *, do_ln=True):
    """Pure-JAX reference mirroring the PyTorch forward (eval mode)."""
    y = encoder_features @ w + b
    if do_ln:
        mu = jnp.mean(y, axis=-1, keepdims=True)
        var = jnp.mean((y - mu) ** 2, axis=-1, keepdims=True)
        y = (y - mu) * lax.rsqrt(var + LN_EPS) * gamma + beta
    return y  # dropout == identity in eval mode


if __name__ == "__main__":
    # Small shapes consistent with the module: (batch, seq, C1) -> (batch, seq, C2).
    B, N, C1, C2 = 2, 9, 64, 128

    key = jax.random.PRNGKey(0)
    kx, kw, kb, kg, kbt = jax.random.split(key, 5)

    x = jax.random.normal(kx, (B, N, C1), jnp.float32)
    w = 0.05 * jax.random.normal(kw, (C1, C2), jnp.float32)   # (in, out) = torch weight.T
    b = 0.01 * jax.random.normal(kb, (C2,), jnp.float32)
    gamma = 1.0 + 0.1 * jax.random.normal(kg, (C2,), jnp.float32)
    beta = 0.1 * jax.random.normal(kbt, (C2,), jnp.float32)

    ref = jax.block_until_ready(feature_resizer_ref(x, w, b, gamma, beta, do_ln=True))

    # Default path (f32 in / f32 out). M=18 -> tm=16 -> 2 grid steps with a
    # partial last block (exercises the no-pad / clipped-writeback path).
    out = feature_resizer_forward(x, w, b, gamma, beta, do_ln=True)
    out = jax.block_until_ready(out)
    assert out.shape == (B, N, C2)
    assert jnp.allclose(out, ref, atol=1e-4, rtol=1e-4), (
        f"max abs err {jnp.max(jnp.abs(out - ref))}")

    # Multi-step small-tile path (3 grid steps, still a partial last block).
    out_small = jax.block_until_ready(
        feature_resizer_forward(x, w, b, gamma, beta, do_ln=True, max_row_tile=8))
    assert jnp.allclose(out_small, ref, atol=1e-4, rtol=1e-4)

    # Perf-mode path: bf16 MXU inputs (cast in wrapper), f32 accumulation,
    # bf16 output (halved HBM read + writeback). Looser tolerance.
    out_bf16 = feature_resizer_forward(
        x, w, b, gamma, beta, do_ln=True,
        matmul_dtype=jnp.bfloat16, out_dtype=jnp.bfloat16)
    out_bf16 = jax.block_until_ready(out_bf16)
    assert out_bf16.dtype == jnp.bfloat16
    assert jnp.allclose(out_bf16.astype(jnp.float32), ref, atol=5e-2, rtol=5e-2), (
        f"bf16 max abs err {jnp.max(jnp.abs(out_bf16.astype(jnp.float32) - ref))}")

    # do_ln=False path (fc + identity dropout only).
    out_noln = jax.block_until_ready(
        feature_resizer_forward(x, w, b, do_ln=False))
    ref_noln = jax.block_until_ready(
        feature_resizer_ref(x, w, b, gamma, beta, do_ln=False))
    assert jnp.allclose(out_noln, ref_noln, atol=1e-4, rtol=1e-4)

    print("KERNEL_OK")
</pallas_src>

<mosaic_0001>
module attributes {stable_mosaic.version = 11 : i64} {
  func.func @_feature_resizer_kernel(%arg0: i32, %arg1: memref<16x64xf32, #tpu.memory_space<vmem>>, %arg2: memref<64x128xf32, #tpu.memory_space<vmem>>, %arg3: memref<3x128xf32, #tpu.memory_space<vmem>>, %arg4: memref<16x128xf32, #tpu.memory_space<vmem>>) attributes {dimension_semantics = [#tpu.dimension_semantics<parallel>], iteration_bounds = array<i64: 2>, scalar_prefetch = 0 : i64, scratch_operands = 0 : i64, tpu.core_type = #tpu.core_type<tc>, window_params = [{transform_indices = @transform_0, window_bounds = array<i64: 16, 64>}, {pipeline_mode = #tpu.pipeline_mode<synchronous>, transform_indices = @transform_1, window_bounds = array<i64: 64, 128>}, {pipeline_mode = #tpu.pipeline_mode<synchronous>, transform_indices = @transform_2, window_bounds = array<i64: 3, 128>}, {transform_indices = @transform_3, window_bounds = array<i64: 16, 128>}]} {
    %c0 = arith.constant 0 : index
    %c0_0 = arith.constant 0 : index
    %0 = vector.load %arg1[%c0, %c0_0] : memref<16x64xf32, #tpu.memory_space<vmem>>, vector<16x64xf32>
    %c0_1 = arith.constant 0 : index
    %c0_2 = arith.constant 0 : index
    %1 = vector.load %arg2[%c0_1, %c0_2] : memref<64x128xf32, #tpu.memory_space<vmem>>, vector<64x128xf32>
    %c0_3 = arith.constant 0 : index
    %c0_4 = arith.constant 0 : index
    %2 = vector.load %arg3[%c0_3, %c0_4] : memref<3x128xf32, #tpu.memory_space<vmem>>, vector<1x128xf32>
    %cst = arith.constant dense<0.000000e+00> : vector<16x128xf32>
    %3 = tpu.matmul %0, %1, %cst {dimension_numbers = #tpu.dot_dimension_numbers<[1], [0], [0], [1], [0, 0, 1, 1], [], []>} : vector<16x64xf32>, vector<64x128xf32>, vector<16x128xf32> -> vector<16x128xf32>
    %4 = vector.broadcast %2 : vector<1x128xf32> to vector<16x128xf32>
    %5 = arith.addf %3, %4 : vector<16x128xf32>
    %c1 = arith.constant 1 : index
    %c0_5 = arith.constant 0 : index
    %6 = vector.load %arg3[%c1, %c0_5] : memref<3x128xf32, #tpu.memory_space<vmem>>, vector<1x128xf32>
    %c2 = arith.constant 2 : index
    %c0_6 = arith.constant 0 : index
    %7 = vector.load %arg3[%c2, %c0_6] : memref<3x128xf32, #tpu.memory_space<vmem>>, vector<1x128xf32>
    %cst_7 = arith.constant dense<0.000000e+00> : vector<16xf32>
    %8 = vector.multi_reduction <add>, %5, %cst_7 [1] : vector<16x128xf32> to vector<16xf32>
    %9 = vector.shape_cast %8 : vector<16xf32> to vector<16x1xf32>
    %cst_8 = arith.constant 1.280000e+02 : f32
    %10 = vector.broadcast %cst_8 : f32 to vector<16x1xf32>
    %11 = arith.divf %9, %10 : vector<16x1xf32>
    %12 = vector.broadcast %11 : vector<16x1xf32> to vector<16x128xf32>
    %13 = arith.subf %5, %12 : vector<16x128xf32>
    %14 = arith.mulf %13, %13 : vector<16x128xf32>
    %cst_9 = arith.constant dense<0.000000e+00> : vector<16xf32>
    %15 = vector.multi_reduction <add>, %14, %cst_9 [1] : vector<16x128xf32> to vector<16xf32>
    %16 = vector.shape_cast %15 : vector<16xf32> to vector<16x1xf32>
    %cst_10 = arith.constant 1.280000e+02 : f32
    %17 = vector.broadcast %cst_10 : f32 to vector<16x1xf32>
    %18 = arith.divf %16, %17 : vector<16x1xf32>
    %19 = vector.broadcast %11 : vector<16x1xf32> to vector<16x128xf32>
    %20 = arith.subf %5, %19 : vector<16x128xf32>
    %cst_11 = arith.constant 9.99999996E-13 : f32
    %21 = vector.broadcast %cst_11 : f32 to vector<16x1xf32>
    %22 = arith.addf %18, %21 : vector<16x1xf32>
    %23 = math.rsqrt %22 : vector<16x1xf32>
    %24 = vector.broadcast %23 : vector<16x1xf32> to vector<16x128xf32>
    %25 = arith.mulf %20, %24 : vector<16x128xf32>
    %26 = vector.broadcast %6 : vector<1x128xf32> to vector<16x128xf32>
    %27 = arith.mulf %25, %26 : vector<16x128xf32>
    %28 = vector.broadcast %7 : vector<1x128xf32> to vector<16x128xf32>
    %29 = arith.addf %27, %28 : vector<16x128xf32>
    %c0_12 = arith.constant 0 : index
    %c0_13 = arith.constant 0 : index
    %30 = vector.load %arg4[%c0_12, %c0_13] : memref<16x128xf32, #tpu.memory_space<vmem>>, vector<16x128xf32>
    tpu.vector_store %arg4[%c0_12, %c0_13], %29 {strides = array<i32>} : memref<16x128xf32, #tpu.memory_space<vmem>>, vector<16x128xf32>,
    return
  }
  func.func @transform_0(%arg0: i32) -> (i32, i32) {
    %c0_i32 = arith.constant 0 : i32
    %c0_i32_0 = arith.constant 0 : i32
    return %arg0, %c0_i32 : i32, i32
  }
  func.func @transform_1(%arg0: i32) -> (i32, i32) {
    %c0_i32 = arith.constant 0 : i32
    %c0_i32_0 = arith.constant 0 : i32
    %c0_i32_1 = arith.constant 0 : i32
    return %c0_i32, %c0_i32_0 : i32, i32
  }
  func.func @transform_2(%arg0: i32) -> (i32, i32) {
    %c0_i32 = arith.constant 0 : i32
    %c0_i32_0 = arith.constant 0 : i32
    %c0_i32_1 = arith.constant 0 : i32
    return %c0_i32, %c0_i32_0 : i32, i32
  }
  func.func @transform_3(%arg0: i32) -> (i32, i32) {
    %c0_i32 = arith.constant 0 : i32
    %c0_i32_0 = arith.constant 0 : i32
    return %arg0, %c0_i32 : i32, i32
  }
}

</mosaic_0001>

<llo_original>
// kernel: tpu_custom_call.1
$region0: #{tpu_custom_call.1}
  #allocation0 [shape = 'u32[]', space=smem, size = 0x4, offset = 0x4, fixed_abs, tag = 'smem constant byte address 0x4 - core index']
  #allocation1 [shape = 'u32[144,128]{1,0:T(1,128)}', space=vmem, size = 0x12000, scoped, tag = 'internal scratch']
  %s0 = inlined_call_operand.hbm [shape: f32[18,64], index: 0, kind: input, shape index: {}]
  %s1 = inlined_call_operand.hbm [shape: f32[64,128], index: 1, kind: input, shape index: {}]
  %s2 = inlined_call_operand.vmem [shape: f32[3,128], index: 2, kind: input, shape index: {}]
  %s3 = inlined_call_operand.hbm [shape: f32[18,128], index: 3, kind: output, shape index: {}]
  %s4 = sld [smem:[#allocation0]]
  $region53: #{tpu_custom_call.1} parent=0
    _
  %s6 = ssub.s32 1, %s4
  %s7 = scalar_select 0, %s6, %s4
  $region1: #{tpu_custom_call.1} parent=0
    #allocation2 [shape = 'u8[16384]{0}', space=vmem, size = 0x4000, scoped, tag = 'input window, operand 0']
    #allocation3 [shape = 's32[2]{0}', space=sflag, size = 0x8, scoped, tag = 'scoped memory for tpu_custom_call.1']
    #allocation4 [shape = 's32[2]{0}', space=sflag, size = 0x8, scoped, tag = 'scoped memory for tpu_custom_call.1']
    #allocation5 [shape = 'u8[32768]{0}', space=vmem, size = 0x8000, scoped, tag = 'input window, operand 1, single buffered']
    #allocation6 [shape = 's32[1]{0}', space=sflag, size = 0x4, scoped, tag = 'scoped memory for tpu_custom_call.1']
    #allocation7 [shape = 'u8[16384]{0}', space=vmem, size = 0x4000, scoped, tag = 'output window, operand 0']
    %8 = vsyncpa [#allocation3], 0
    %s9 = scalar_lea.sflag [#allocation3], 1
    %10 = vsyncpa %s9, 0
    %11 = vsyncpa [#allocation6], 0
    %12 = vsyncpa [#allocation4], 0
    %s13 = scalar_lea.sflag [#allocation4], 1
    %14 = vsyncpa %s13, 0
    loop: start=0, step=1, limit=4
    $region2: #{tpu_custom_call.1} parent=1 // loop_pre_header
      _
    $region3: #{tpu_custom_call.1} parent=1 // loop_header
      %s16 = sphi 0, %s20
      %p17 = scmp.ge.s32.totalorder %s16, 4
      %s26 = sphi 0, %s28
      %s29 = sphi 0, %s26
      %s30 = sphi 0, %s29
      %s46 = sphi 0, %s30
      %s50 = sphi 0, %s50
      %s52 = sphi 0, %s50
      %s53 = sphi 0, %s52
      %s67 = sphi 0, %s53
      %s71 = sphi 0, %s71
      %s73 = sphi 0, %s71
      %s74 = sphi 0, %s73
      %s88 = sphi 0, %s74
      %s94 = sphi 0, %s96
      %s97 = sphi 0, %s94
      %s98 = sphi 0, %s97
      %s114 = sphi 0, %s98
    $region4: #{tpu_custom_call.1} parent=1 // loop_header_branch
      %19 = sbr.rel (%p17) target = $region8
    $region5: #{tpu_custom_call.1} parent=1 // loop_body
      %s21 = ssub.s32 %s16, 1
      %s22 = ssub.s32 %s16, 2
      %s23 = sadd.s32 %s16, 1
      %s24 = ssub.s32 %s16, %s23
      %p25 = scmp.eq.s32.totalorder %s24, 0
      %s27 = sadd.s32 %s26, 1
      %s28 = scalar_select %p25, %s26, %s27
      %p31 = pneg %p25
      %p32 = scmp.eq.s32.totalorder %s16, 1
      %p33 = por %p31, %p32
      %p34 = scmp.ne.s32.totalorder %s26, %s29
      %p35 = scmp.eq.s32.totalorder %s16, 0
      %p36 = por %p34, %p35
      %p37 = scmp.ne.s32.totalorder %s26, %s29
      %p38 = scmp.eq.s32.totalorder %s21, 1
      %p39 = por %p37, %p38
      %p40 = scmp.ne.s32.totalorder %s29, %s30
      %p41 = scmp.eq.s32.totalorder %s21, 0
      %p42 = por %p40, %p41
      %p43 = scmp.ne.s32.totalorder %s29, %s30
      %p44 = scmp.eq.s32.totalorder %s22, 1
      %p45 = por %p43, %p44
      %p47 = scmp.ne.s32.totalorder %s30, %s46
      %p48 = scmp.eq.s32.totalorder %s22, 0
      %p49 = por %p47, %p48
      %s51 = sadd.s32 %s50, 1
      %p54 = scmp.eq.s32.totalorder %s16, 1
      %p55 = scmp.ne.s32.totalorder %s50, %s52
      %p56 = scmp.eq.s32.totalorder %s16, 0
      %p57 = por %p55, %p56
      %p58 = scmp.ne.s32.totalorder %s50, %s52
      %p59 = scmp.eq.s32.totalorder %s21, 1
      %p60 = por %p58, %p59
      %p61 = scmp.ne.s32.totalorder %s52, %s53
      %p62 = scmp.eq.s32.totalorder %s21, 0
      %p63 = por %p61, %p62
      %p64 = scmp.ne.s32.totalorder %s52, %s53
      %p65 = scmp.eq.s32.totalorder %s22, 1
      %p66 = por %p64, %p65
      %p68 = scmp.ne.s32.totalorder %s53, %s67
      %p69 = scmp.eq.s32.totalorder %s22, 0
      %p70 = por %p68, %p69
      %s72 = sadd.s32 %s71, 1
      %p75 = scmp.eq.s32.totalorder %s16, 1
      %p76 = scmp.ne.s32.totalorder %s71, %s73
      %p77 = scmp.eq.s32.totalorder %s16, 0
      %p78 = por %p76, %p77
      %p79 = scmp.ne.s32.totalorder %s71, %s73
      %p80 = scmp.eq.s32.totalorder %s21, 1
      %p81 = por %p79, %p80
      %p82 = scmp.ne.s32.totalorder %s73, %s74
      %p83 = scmp.eq.s32.totalorder %s21, 0
      %p84 = por %p82, %p83
      %p85 = scmp.ne.s32.totalorder %s73, %s74
      %p86 = scmp.eq.s32.totalorder %s22, 1
      %p87 = por %p85, %p86
      %p89 = scmp.ne.s32.totalorder %s74, %s88
      %p90 = scmp.eq.s32.totalorder %s22, 0
      %p91 = por %p89, %p90
      %s92 = ssub.s32 %s16, %s23
      %p93 = scmp.eq.s32.totalorder %s92, 0
      %s95 = sadd.s32 %s94, 1
      %s96 = scalar_select %p93, %s94, %s95
      %p99 = pneg %p93
      %p100 = scmp.eq.s32.totalorder %s16, 1
      %p101 = por %p99, %p100
      %p102 = scmp.ne.s32.totalorder %s94, %s97
      %p103 = scmp.eq.s32.totalorder %s16, 0
      %p104 = por %p102, %p103
      %p105 = scmp.ne.s32.totalorder %s94, %s97
      %p106 = scmp.eq.s32.totalorder %s21, 1
      %p107 = por %p105, %p106
      %p108 = scmp.ne.s32.totalorder %s97, %s98
      %p109 = scmp.eq.s32.totalorder %s21, 0
      %p110 = por %p108, %p109
      %p111 = scmp.ne.s32.totalorder %s97, %s98
      %p112 = scmp.eq.s32.totalorder %s22, 1
      %p113 = por %p111, %p112
      %p115 = scmp.ne.s32.totalorder %s98, %s114
      %p116 = scmp.eq.s32.totalorder %s22, 0
      %p117 = por %p115, %p116
      %p118 = scmp.le.s32.totalorder 1, %s16
      %p119 = scmp.lt.s32.totalorder %s16, 3
      %p120 = pnand %p118, %p119
      %p121 = pneg %p120
      // Predicated region
      $region9: #{tpu_custom_call.1} parent=5 // pred_check
        _
      $region10: #{tpu_custom_call.1} parent=5 // pred_check_branch
        %123 = sbr.rel (%p120) target = $region12
      $region11: #{tpu_custom_call.1} parent=5 // pred_region
        %s124 = ssub.s32 %s16, 1
        // Predicated region
        $region13: #{tpu_custom_call.1} parent=11 // pred_check
          %p125 = pneg %p63
        $region14: #{tpu_custom_call.1} parent=11 // pred_check_branch
          %127 = sbr.rel (%p125) target = $region16
        $region15: #{tpu_custom_call.1} parent=11 // pred_region
          %s129 = ssub.s32 1024, 1024
          %130 = vsyncadd [#allocation6], %s129
          %s131 = sshll.u32 [#allocation5], 4
          %s132 = int_to_ptr.vmem [resolvable:$true] %s131
          %137 = dma.hbm_to_vmem [thread:$0]  %s1, 1024, %s132, [#allocation6], 128, 128, 8
        $region16: #{tpu_custom_call.1} parent=11 // pred_fallthru
          _
        // Predicated region
        $region17: #{tpu_custom_call.1} parent=11 // pred_check
          %p138 = pneg %p84
        $region18: #{tpu_custom_call.1} parent=11 // pred_check_branch
          %140 = sbr.rel (%p138) target = $region20
        $region19: #{tpu_custom_call.1} parent=11 // pred_region
          _
        $region20: #{tpu_custom_call.1} parent=11 // pred_fallthru
          _
      $region12: #{tpu_custom_call.1} parent=5 // pred_fallthru
        _
      %p141 = scmp.lt.s32.totalorder %s16, 2
      // Predicated region
      $region21: #{tpu_custom_call.1} parent=5 // pred_check
        %p142 = pneg %p141
      $region22: #{tpu_custom_call.1} parent=5 // pred_check_branch
        %144 = sbr.rel (%p142) target = $region24
      $region23: #{tpu_custom_call.1} parent=5 // pred_region
        // Predicated region
        $region25: #{tpu_custom_call.1} parent=23 // pred_check
          %p145 = pneg %p36
        $region26: #{tpu_custom_call.1} parent=23 // pred_check_branch
          %147 = sbr.rel (%p145) target = $region28
        $region27: #{tpu_custom_call.1} parent=23 // pred_region
          %s148 = sand.u32 %s26, 1
          %s149 = scalar_lea.sflag [#allocation3], %s148
          %s150 = sand.u32 %s26, 1
          %s151 = smul.addr %s150, 16
          %s152 = scalar_lea.vmem [#allocation2], %s151
          %s153 = smul.u32 2, %s16
          %s154 = ssub.s32 3, %s153
          %p155 = scmp.lt.s32.totalorder %s154, 2
          %s156 = scalar_select %p155, %s154, 2
          %s157 = smul.u32 128, %s156
          %s159 = ssub.s32 256, %s157
          %160 = vsyncadd %s149, %s159
          %p161 = scmp.ne.s32.totalorder 0, %s157
          %s162 = smul.addr %s153, 128
          %s163 = scalar_lea.hbm %s0, %s162
          %s164 = smul.u32 8, %s156
          %s165 = sshll.u32 %s152, 4
          %s166 = int_to_ptr.vmem [resolvable:$true] %s165
          %s167 = sshll.u32 %s164, 4
          %171 = dma.hbm_to_vmem [thread:$0]  (%p161), %s163, %s167, %s166, %s149, 128, 128, 8
        $region28: #{tpu_custom_call.1} parent=23 // pred_fallthru
          _
      $region24: #{tpu_custom_call.1} parent=5 // pred_fallthru
        _
      %p172 = scmp.le.s32.totalorder 1, %s16
      %p173 = scmp.lt.s32.totalorder %s16, 3
      %p174 = pnand %p172, %p173
      %p175 = pneg %p174
      // Predicated region
      $region29: #{tpu_custom_call.1} parent=5 // pred_check
        _
      $region30: #{tpu_custom_call.1} parent=5 // pred_check_branch
        %177 = sbr.rel (%p174) target = $region32
      $region31: #{tpu_custom_call.1} parent=5 // pred_region
        %s178 = ssub.s32 %s16, 1
        %s179 = sand.u32 %s29, 1
        %s180 = scalar_lea.sflag [#allocation3], %s179
        %s181 = sand.u32 %s29, 1
        %s182 = smul.addr %s181, 16
        %s183 = scalar_lea.vmem [#allocation2], %s182
        // Predicated region
        $region33: #{tpu_custom_call.1} parent=31 // pred_check
          %p184 = pneg %p42
        $region34: #{tpu_custom_call.1} parent=31 // pred_check_branch
          %186 = sbr.rel (%p184) target = $region36
        $region35: #{tpu_custom_call.1} parent=31 // pred_region
          %187 = dma.done %s180, 256
        $region36: #{tpu_custom_call.1} parent=31 // pred_fallthru
          _
        // Predicated region
        $region37: #{tpu_custom_call.1} parent=31 // pred_check
          %p188 = pneg %p63
        $region38: #{tpu_custom_call.1} parent=31 // pred_check_branch
          %190 = sbr.rel (%p188) target = $region40
        $region39: #{tpu_custom_call.1} parent=31 // pred_region
          %191 = dma.done [#allocation6], 1024
        $region40: #{tpu_custom_call.1} parent=31 // pred_fallthru
          _
        %s192 = sand.u32 %s29, 1
        %s193 = scalar_lea.sflag [#allocation3], %s192
        %s194 = sand.u32 %s29, 1
        %s195 = smul.addr %s194, 16
        %s196 = scalar_lea.vmem [#allocation2], %s195
        %p197 = pneg %p42
        %p198 = pneg %p39
        %p199 = pneg %p63
        %p200 = pneg %p60
        %p201 = pneg %p84
        %p202 = pneg %p81
        %p203 = pneg %p110
        %p204 = pneg %p107
        %s205 = sand.u32 %s97, 1
        %s206 = scalar_lea.sflag [#allocation4], %s205
        %s207 = sand.u32 %s97, 1
        %s208 = smul.addr %s207, 16
        %s209 = scalar_lea.vmem [#allocation7], %s208
        %s210 = smul.u32 2, %s21
        %s211 = ssub.s32 3, %s210
        %p212 = scmp.lt.s32.totalorder %s211, 2
        %s213 = scalar_select %p212, %s211, 2
        %s214 = smul.u32 128, %s213
        %s215 = smul.u32 2, %s21
        %s216 = ssub.s32 3, %s215
        %p217 = scmp.lt.s32.totalorder %s216, 2
        %s218 = scalar_select %p217, %s216, 2
        %s219 = smul.u32 128, %s218
        %v220 = vld [vmem:[%s183] sm:$0xff]
        %v221 = vld [vmem:[%s183 + $0x8] sm:$0xff]
        %v222 = vld [vmem:[#allocation5] sm:$0xff]
        %v223 = vld [vmem:[#allocation5 + $0x8] sm:$0xff]
        %v224 = vld [vmem:[#allocation5 + $0x10] sm:$0xff]
        %v225 = vld [vmem:[#allocation5 + $0x18] sm:$0xff]
        %v226 = vld [vmem:[#allocation5 + $0x20] sm:$0xff]
        %v227 = vld [vmem:[#allocation5 + $0x28] sm:$0xff]
        %v228 = vld [vmem:[#allocation5 + $0x30] sm:$0xff]
        %v229 = vld [vmem:[#allocation5 + $0x38] sm:$0xff]
        %v230 = vld [vmem:[%s2] sm:$0x1]
        %v231 = vlaneseq
        %v232 = vshrl.u32 %v231, 7
        %v233 = vsub.s32 0, %v232
        %v234 = vrot.slane %v230, %v233
        %vm235 = vcmask 523264
        %v237 = vsel %vm235, %v220, 0
        %v240 = vsel %vm235, %v221, 0
        %242 = vmatprep.subr.mxu0 0.0
        %243 = vmatpush1.msra.mxu0 %v222
        %244 = vmatprep.subr.mxu0 0.0
        %245 = vmatpush1.msra.mxu0 %v223
        %246 = vmatprep.subr.mxu0 0.0
        %247 = vmatpush1.msra.mxu0 %v224
        %248 = vmatprep.subr.mxu0 0.0
        %249 = vmatpush1.msra.mxu0 %v225
        %250 = vmatprep.subr.mxu0 0.0
        %251 = vmatpush1.msra.mxu0 %v226
        %252 = vmatprep.subr.mxu0 0.0
        %253 = vmatpush1.msra.mxu0 %v227
        %254 = vmatprep.subr.mxu0 0.0
        %255 = vmatpush1.msra.mxu0 %v228
        %256 = vmatprep.subr.mxu0 0.0
        %257 = vmatpush1.msra.mxu0 %v229
        %258 = vmatprep.subr.mxu0 0.0
        %259 = vmatpush1.msra.mxu0 0.0
        %260 = vmatprep.subr.mxu0 0.0
        %261 = vmatpush1.msra.mxu0 0.0
        %262 = vmatprep.subr.mxu0 0.0
        %263 = vmatpush1.msra.mxu0 0.0
        %264 = vmatprep.subr.mxu0 0.0
        %265 = vmatpush1.msra.mxu0 0.0
        %266 = vmatprep.subr.mxu0 0.0
        %267 = vmatpush1.msra.mxu0 0.0
        %268 = vmatprep.subr.mxu0 0.0
        %269 = vmatpush1.msra.mxu0 0.0
        %270 = vmatprep.subr.mxu0 0.0
        %271 = vmatpush1.msra.mxu0 0.0
        %272 = vmatprep.subr.mxu0 0.0
        %273 = vmatpush1.msra.mxu0 0.0
        %274 = vmatprep.subr.mxu0 0.0
        %275 = vmatpush1.msra.mxu0 0.0
        %276 = vmatprep.subr.mxu0 0.0
        %277 = vmatpush1.msra.mxu0 0.0
        %278 = vmatprep.subr.mxu0 0.0
        %279 = vmatpush1.msra.mxu0 0.0
        %280 = vmatprep.subr.mxu0 0.0
        %281 = vmatpush1.msra.mxu0 0.0
        %282 = vmatprep.subr.mxu0 0.0
        %283 = vmatpush1.msra.mxu0 0.0
        %284 = vmatprep.subr.mxu0 0.0
        %285 = vmatpush1.msra.mxu0 0.0
        %286 = vmatprep.subr.mxu0 0.0
        %287 = vmatpush1.msra.mxu0 0.0
        %288 = vmatprep.subr.mxu0 0.0
        %289 = vmatpush1.msra.mxu0 0.0
        %290 = vmatprep.subr.mxu0 0.0
        %291 = vmatpush1.msra.mxu0 0.0
        %292 = vmatprep.subr.mxu0 0.0
        %293 = vmatpush1.msra.mxu0 0.0
        %294 = vmatprep.subr.mxu0 0.0
        %295 = vmatpush1.msra.mxu0 0.0
        %296 = vmatprep.subr.mxu0 0.0
        %297 = vmatpush1.msra.mxu0 0.0
        %298 = vmatprep.subr.mxu0 0.0
        %299 = vmatpush1.msra.mxu0 0.0
        %300 = vmatprep.subr.mxu0 0.0
        %301 = vmatpush1.msra.mxu0 0.0
        %302 = vmatprep.subr.mxu0 0.0
        %303 = vmatpush1.msra.mxu0 0.0
        %304 = vmatprep.subr.mxu0 0.0
        %305 = vmatpush1.msra.mxu0 0.0
        %306 = vmatprep.mubr.f32.mxu0 0.0
        %307 = vmatmul.mubr.f32.gmra.mrb[0].mxu0 %v237
        %v308 = vpop.f32.mrb[0].mxu0
        %v309 = vadd.f32 %v234, %v308
        %v310 = vpop.f32.mrb[0].mxu0
        %311 = vmatprep.mubr.f32.mxu0 0.0
        %312 = vmatmul.mubr.f32.gmra.mrb[0].mxu0 %v240
        %v313 = vpop.f32.mrb[0].mxu0
        %v314 = vadd.f32 %v234, %v313
        %v315 = vpop.f32.mrb[0].mxu0
        %316 = vdwg.mxu0
        %v317 = vld [vmem:[%s2 + $0x1] sm:$0x1]
        %v318 = vld [vmem:[%s2 + $0x2] sm:$0x1]
        %319 = vadd.xlane.f32.xlu0 %v309
        %v320 = vpop.xlane.xlu0 %319
        %321 = vadd.xlane.f32.xlu0 %v314
        %v322 = vpop.xlane.xlu0 %321
        %v323 = vrcp.pop 128.0
        %v324 = vmul.f32 %v320, %v323
        %v325 = vmul.f32 %v322, %v323
        %v326 = vsub.f32 %v309, %v324
        %v327 = vsub.f32 %v314, %v325
        %v328 = vmul.f32 %v326, %v326
        %v329 = vmul.f32 %v327, %v327
        %330 = vadd.xlane.f32.xlu0 %v328
        %v331 = vpop.xlane.xlu0 %330
        %332 = vadd.xlane.f32.xlu0 %v329
        %v333 = vpop.xlane.xlu0 %332
        %v334 = vmul.f32 %v331, %v323
        %v335 = vmul.f32 %v333, %v323
        %v336 = vadd.f32 %v334, 1e-12
        %v337 = vadd.f32 %v335, 1e-12
        %v338 = vrsqrt.pop %v336
        %v339 = vrsqrt.pop %v337
        %v340 = vmul.f32 %v326, %v338
        %v341 = vmul.f32 %v327, %v339
        %v342 = vlaneseq
        %v343 = vshrl.u32 %v342, 7
        %v344 = vsub.s32 0, %v343
        %v345 = vrot.slane %v317, %v344
        %v346 = vmul.f32 %v340, %v345
        %v347 = vmul.f32 %v341, %v345
        %v348 = vlaneseq
        %v349 = vshrl.u32 %v348, 7
        %v350 = vsub.s32 0, %v349
        %v351 = vrot.slane %v318, %v350
        %v352 = vadd.f32 %v346, %v351
        %v353 = vadd.f32 %v347, %v351
        %354 = vst [vmem:[%s209] sm:$0xff] %v352
        %355 = vst [vmem:[%s209 + $0x8] sm:$0xff] %v353
        %s356 = sand.u32 %s97, 1
        %s357 = scalar_lea.sflag [#allocation4], %s356
        %s358 = sand.u32 %s97, 1
        %s359 = smul.addr %s358, 16
        %s360 = scalar_lea.vmem [#allocation7], %s359
        // Predicated region
        $region41: #{tpu_custom_call.1} parent=31 // pred_check
          %p361 = pneg %p107
        $region42: #{tpu_custom_call.1} parent=31 // pred_check_branch
          %363 = sbr.rel (%p361) target = $region44
        $region43: #{tpu_custom_call.1} parent=31 // pred_region
          %s364 = smul.u32 2, %s21
          %s365 = ssub.s32 3, %s364
          %p366 = scmp.lt.s32.totalorder %s365, 2
          %s367 = scalar_select %p366, %s365, 2
          %s368 = smul.u32 128, %s367
          %s370 = ssub.s32 256, %s368
          %371 = vsyncadd %s357, %s370
          %p372 = scmp.ne.s32.totalorder 0, %s368
          %s373 = smul.addr %s364, 128
          %s374 = scalar_lea.hbm %s3, %s373
          %s375 = smul.u32 8, %s367
          %s376 = sshll.u32 %s360, 4
          %s377 = int_to_ptr.vmem [resolvable:$true] %s376
          %s378 = sshll.u32 %s375, 4
          %382 = dma.vmem_to_hbm [thread:$0]  (%p372), %s377, %s378, %s374, %s357, 128, 128, 8
        $region44: #{tpu_custom_call.1} parent=31 // pred_fallthru
          _
      $region32: #{tpu_custom_call.1} parent=5 // pred_fallthru
        _
      %p383 = scmp.le.s32.totalorder 2, %s16
      // Predicated region
      $region45: #{tpu_custom_call.1} parent=5 // pred_check
        %p384 = pneg %p383
      $region46: #{tpu_custom_call.1} parent=5 // pred_check_branch
        %386 = sbr.rel (%p384) target = $region48
      $region47: #{tpu_custom_call.1} parent=5 // pred_region
        %s387 = ssub.s32 %s16, 2
        // Predicated region
        $region49: #{tpu_custom_call.1} parent=47 // pred_check
          %p388 = pneg %p113
        $region50: #{tpu_custom_call.1} parent=47 // pred_check_branch
          %390 = sbr.rel (%p388) target = $region52
        $region51: #{tpu_custom_call.1} parent=47 // pred_region
          %s391 = sand.u32 %s98, 1
          %s392 = scalar_lea.sflag [#allocation4], %s391
          %s393 = sand.u32 %s98, 1
          %s394 = smul.addr %s393, 16
          %s395 = scalar_lea.vmem [#allocation7], %s394
          %396 = dma.done %s392, 256
        $region52: #{tpu_custom_call.1} parent=47 // pred_fallthru
          _
      $region48: #{tpu_custom_call.1} parent=5 // pred_fallthru
        _
    $region6: #{tpu_custom_call.1} parent=1 // loop_footer
      %s20 = sadd.s32 1, %s16
    $region7: #{tpu_custom_call.1} parent=1 // loop_footer_branch
      %15 = sbr.rel target = $region3
    $region8: #{tpu_custom_call.1} parent=1 // loop_exit
      _
    %397 = vsyncpa [#allocation3], 1
    %s398 = scalar_lea.sflag [#allocation3], 1
    %399 = vsyncpa %s398, 1
    %400 = vsyncpa [#allocation6], 1
    %401 = vsyncpa [#allocation4], 1
    %s402 = scalar_lea.sflag [#allocation4], 1
    %403 = vsyncpa %s402, 1

</llo_original>
